<compile_context>
chip_gen: v5e
topology: v5e:2x2
jax: 0.10.0
libtpu: 0.0.40
codegen_flags: <defaults>
</compile_context>

<pallas_src>
import functools

import jax
import jax.numpy as jnp
from jax.experimental import pallas as pl
from jax.experimental.pallas import tpu as pltpu


def _round_up(x, m):
    return (x + m - 1) // m * m


def _sublane(dtype):
    # Rows per vreg sublane tile: 8 for 4-byte, 16 for 2-byte, 32 for 1-byte.
    return max(8, 32 // jnp.dtype(dtype).itemsize)


def _vmem_capacity_bytes():
    # Generation-aware physical VMEM (128 MiB v5e/v6e, 64 MiB per TC on v7x).
    try:
        return int(pltpu.get_tpu_info().vmem_capacity_bytes)
    except Exception:
        return 64 << 20  # conservative fallback


def _fused_matmul_kernel(nf_ref, w_ref, *rest, use_bias):
    """sum/mean path: neighbor reduction folded into the MXU contraction.

    nf_ref : (tile_n, K*D)  neighbor features, input dtype (lane-dense)
    w_ref  : (K*D, H_pad)   K-replicated weight (1/K-scaled for 'mean')
    b_ref  : (1, H_pad)     only present when use_bias
    o_ref  : (tile_n, H_pad)
    """
    if use_bias:
        b_ref, o_ref = rest
    else:
        (o_ref,) = rest
    # Mixed input/weight dtypes are promoted by jnp.dot; for matching dtypes
    # (the common case) the operands go to the MXU natively, f32 accumulate.
    hidden = jnp.dot(nf_ref[...], w_ref[...], preferred_element_type=jnp.float32)
    if use_bias:
        hidden = hidden + b_ref[...].astype(jnp.float32)
    o_ref[...] = hidden.astype(o_ref.dtype)


def _max_project_kernel(nf_ref, w_ref, *rest, use_bias):
    """max path: explicit (exact) max over K, then projection.

    nf_ref : (tile_n, K, D)  neighbor features, input dtype
    w_ref  : (D, H_pad)
    """
    if use_bias:
        b_ref, o_ref = rest
    else:
        (o_ref,) = rest
    aggr = jnp.max(nf_ref[...], axis=1)            # exact in input dtype, no upcast copy
    hidden = jnp.dot(aggr.astype(w_ref.dtype), w_ref[...],
                     preferred_element_type=jnp.float32)
    if use_bias:
        hidden = hidden + b_ref[...].astype(jnp.float32)
    o_ref[...] = hidden.astype(o_ref.dtype)


def neighbor_aggregator(neighbor_feature, weight, bias=None,
                        aggr_method="mean", *, tile_n=None,
                        vmem_budget_bytes=None):
    """Pallas wrapper. neighbor_feature: (N, K, D); weight: (D, H); bias: (H,)."""
    if aggr_method not in ("mean", "sum", "max"):
        raise ValueError(f"unknown aggr_method {aggr_method!r}")

    N, K, D = neighbor_feature.shape
    Dw, H = weight.shape
    assert D == Dw, "feature dim mismatch"
    use_bias = bias is not None

    nf_dtype = neighbor_feature.dtype
    w_dtype = weight.dtype
    out_dtype = jnp.promote_types(nf_dtype, w_dtype)

    nf_bytes = jnp.dtype(nf_dtype).itemsize
    w_bytes = jnp.dtype(w_dtype).itemsize
    out_bytes = jnp.dtype(out_dtype).itemsize
    sublane = max(_sublane(nf_dtype), _sublane(out_dtype))

    # Lane-dense output: pad H to a multiple of 128 (extra zero columns are
    # free MXU flops and avoid masked stores); sliced back afterwards.
    H_pad = _round_up(max(H, 128), 128)

    # Generation-aware VMEM budgeting (leave headroom for Mosaic scratch).
    vmem_cap = _vmem_capacity_bytes()
    if vmem_budget_bytes is None:
        vmem_budget_bytes = max(32 << 20, vmem_cap - (16 << 20))

    fold_reduction = aggr_method in ("mean", "sum")

    if fold_reduction:
        # Fold the K reduction into the MXU: W_rep = tile(W_scaled, (K, 1)).
        # 1/K is applied in f32 then cast back (single extra rounding of W).
        w = weight.astype(jnp.float32)
        if aggr_method == "mean":
            w = w * (1.0 / K)
        w = w.astype(w_dtype)
        if H_pad != H:
            w = jnp.pad(w, ((0, 0), (0, H_pad - H)))
        w_kernel = jnp.tile(w, (K, 1))                     # (K*D, H_pad)
        nf_kernel = neighbor_feature.reshape(N, K * D)     # lane-dense minor dim
        kd_lane = _round_up(K * D, 128)
        per_row = 2 * kd_lane * nf_bytes + 2 * H_pad * out_bytes
        weight_cost = 2 * _round_up(K * D, _sublane(w_dtype)) * H_pad * w_bytes
    else:
        # Keep the 3-D layout for max: an in-kernel reshape of (tile_n, K*D)
        # back to (tile_n, K, D) would cross (8,128) tiles and force a relayout.
        w = weight
        if H_pad != H:
            w = jnp.pad(w, ((0, 0), (0, H_pad - H)))
        w_kernel = w
        nf_kernel = neighbor_feature
        per_row = (2 * _round_up(K, _sublane(nf_dtype)) * _round_up(D, 128) * nf_bytes
                   + 2 * H_pad * out_bytes)
        weight_cost = 2 * _round_up(D, _sublane(w_dtype)) * H_pad * w_bytes

    bias_cost = 2 * H_pad * w_bytes if use_bias else 0

    # --- choose node tile against the VMEM budget (double-buffered input/output
    #     + resident weight), cap at 4096 rows, keep >= 2 grid steps for v7x.
    # TODO(synk): for very large K*D or D*H add a K/H tiling grid axis so the
    # replicated weight need not be fully resident (not needed at demo sizes).
    if tile_n is None:
        avail = vmem_budget_bytes - weight_cost - bias_cost - (4 << 20)
        max_rows = max(sublane, avail // per_row)
        tile_n = int(min(4096, max_rows, _round_up(N, sublane)))
        if N > sublane:  # >= 2 grid steps so v7x's second TensorCore gets work
            tile_n = min(tile_n, _round_up(-(-N // 2), sublane))
        if tile_n >= 128:
            tile_n = (tile_n // 128) * 128
        else:
            tile_n = _round_up(tile_n, sublane)
        tile_n = max(tile_n, sublane)

    # --- pad N so the grid divides evenly (pad rows sliced off afterwards).
    N_pad = _round_up(N, tile_n)
    if N_pad != N:
        pad = [(0, N_pad - N)] + [(0, 0)] * (nf_kernel.ndim - 1)
        nf_kernel = jnp.pad(nf_kernel, pad)

    if fold_reduction:
        nf_spec = pl.BlockSpec((tile_n, K * D), lambda i: (i, 0))
        w_spec = pl.BlockSpec((K * D, H_pad), lambda i: (0, 0))
        kernel = functools.partial(_fused_matmul_kernel, use_bias=use_bias)
    else:
        nf_spec = pl.BlockSpec((tile_n, K, D), lambda i: (i, 0, 0))
        w_spec = pl.BlockSpec((D, H_pad), lambda i: (0, 0))
        kernel = functools.partial(_max_project_kernel, use_bias=use_bias)

    # TODO(synk): mark w_spec / bias spec with pipeline_mode=pl.Buffered(1) and
    # sweep pl.Buffered(3) on nf_spec if a trace shows exposed DMA.
    in_specs = [nf_spec, w_spec]
    inputs = [nf_kernel, w_kernel]
    if use_bias:
        bias_pad = jnp.pad(bias, (0, H_pad - H)) if H_pad != H else bias
        in_specs.append(pl.BlockSpec((1, H_pad), lambda i: (0, 0)))
        inputs.append(bias_pad.reshape(1, H_pad))

    vmem_needed = per_row * tile_n + weight_cost + bias_cost + (4 << 20)
    vmem_limit = int(min(max(vmem_needed, 32 << 20), vmem_cap - (16 << 20)))

    out = pl.pallas_call(
        kernel,
        out_shape=jax.ShapeDtypeStruct((N_pad, H_pad), out_dtype),
        grid_spec=pltpu.PrefetchScalarGridSpec(
            num_scalar_prefetch=0,
            grid=(N_pad // tile_n,),
            in_specs=in_specs,
            out_specs=pl.BlockSpec((tile_n, H_pad), lambda i: (i, 0)),
        ),
        compiler_params=pltpu.CompilerParams(
            dimension_semantics=("parallel",),
            vmem_limit_bytes=vmem_limit),
    )(*inputs)

    return out[:N, :H]


def kaiming_uniform(key, shape, dtype=jnp.float32):
    # Matches torch.nn.init.kaiming_uniform_ defaults on a 2-D tensor:
    # fan_in = shape[1], bound = sqrt(6 / fan_in).
    fan_in = shape[1]
    bound = (6.0 / fan_in) ** 0.5
    return jax.random.uniform(key, shape, dtype, minval=-bound, maxval=bound)


if __name__ == "__main__":
    key = jax.random.PRNGKey(0)
    k_feat, k_w = jax.random.split(key)

    num_nodes, num_neighbors = 16, 8
    input_dim, output_dim = 32, 32

    neighbor_feature = jax.random.normal(
        k_feat, (num_nodes, num_neighbors, input_dim), dtype=jnp.float32)
    weight = kaiming_uniform(k_w, (input_dim, output_dim))
    bias = jnp.zeros((output_dim,), jnp.float32)   # init.zeros_ in the module

    for aggr_method in ("mean", "sum", "max"):
        for use_bias in (False, True):
            b = bias if use_bias else None
            out = neighbor_aggregator(neighbor_feature, weight, b,
                                      aggr_method=aggr_method)
            out = jax.block_until_ready(out)

            if aggr_method == "mean":
                aggr = neighbor_feature.mean(axis=1)
            elif aggr_method == "sum":
                aggr = neighbor_feature.sum(axis=1)
            else:
                aggr = neighbor_feature.max(axis=1)
            ref = aggr @ weight
            if use_bias:
                ref = ref + bias

            assert out.shape == (num_nodes, output_dim)
            assert jnp.allclose(out, ref, atol=1e-4, rtol=1e-4), (
                aggr_method, use_bias)

    print("KERNEL_OK")
</pallas_src>

<mosaic_0001>
module attributes {stable_mosaic.version = 11 : i64} {
  func.func @_fused_matmul_kernel(%arg0: i32, %arg1: memref<8x256xf32, #tpu.memory_space<vmem>>, %arg2: memref<256x128xf32, #tpu.memory_space<vmem>>, %arg3: memref<8x128xf32, #tpu.memory_space<vmem>>) attributes {dimension_semantics = [#tpu.dimension_semantics<parallel>], iteration_bounds = array<i64: 2>, scalar_prefetch = 0 : i64, scratch_operands = 0 : i64, tpu.core_type = #tpu.core_type<tc>, window_params = [{transform_indices = @transform_0, window_bounds = array<i64: 8, 256>}, {pipeline_mode = #tpu.pipeline_mode<synchronous>, transform_indices = @transform_1, window_bounds = array<i64: 256, 128>}, {transform_indices = @transform_2, window_bounds = array<i64: 8, 128>}]} {
    %c0 = arith.constant 0 : index
    %c0_0 = arith.constant 0 : index
    %0 = vector.load %arg1[%c0, %c0_0] : memref<8x256xf32, #tpu.memory_space<vmem>>, vector<8x256xf32>
    %c0_1 = arith.constant 0 : index
    %c0_2 = arith.constant 0 : index
    %1 = vector.load %arg2[%c0_1, %c0_2] : memref<256x128xf32, #tpu.memory_space<vmem>>, vector<256x128xf32>
    %cst = arith.constant dense<0.000000e+00> : vector<8x128xf32>
    %2 = tpu.matmul %0, %1, %cst {dimension_numbers = #tpu.dot_dimension_numbers<[1], [0], [0], [1], [0, 0, 1, 1], [], []>} : vector<8x256xf32>, vector<256x128xf32>, vector<8x128xf32> -> vector<8x128xf32>
    %c0_3 = arith.constant 0 : index
    %c0_4 = arith.constant 0 : index
    %3 = vector.load %arg3[%c0_3, %c0_4] : memref<8x128xf32, #tpu.memory_space<vmem>>, vector<8x128xf32>
    tpu.vector_store %arg3[%c0_3, %c0_4], %2 {strides = array<i32>} : memref<8x128xf32, #tpu.memory_space<vmem>>, vector<8x128xf32>,
    return
  }
  func.func @transform_0(%arg0: i32) -> (i32, i32) {
    %c0_i32 = arith.constant 0 : i32
    %c0_i32_0 = arith.constant 0 : i32
    return %arg0, %c0_i32 : i32, i32
  }
  func.func @transform_1(%arg0: i32) -> (i32, i32) {
    %c0_i32 = arith.constant 0 : i32
    %c0_i32_0 = arith.constant 0 : i32
    %c0_i32_1 = arith.constant 0 : i32
    return %c0_i32, %c0_i32_0 : i32, i32
  }
  func.func @transform_2(%arg0: i32) -> (i32, i32) {
    %c0_i32 = arith.constant 0 : i32
    %c0_i32_0 = arith.constant 0 : i32
    return %arg0, %c0_i32 : i32, i32
  }
}

</mosaic_0001>

<llo_original>
// kernel: tpu_custom_call.1
$region0: #{tpu_custom_call.1}
  #allocation0 [shape = 'u32[]', space=smem, size = 0x4, offset = 0x4, fixed_abs, tag = 'smem constant byte address 0x4 - core index']
  #allocation1 [shape = 'u32[72,128]{1,0:T(1,128)}', space=vmem, size = 0x9000, scoped, tag = 'internal scratch']
  %s0 = inlined_call_operand.hbm [shape: f32[16,256], index: 0, kind: input, shape index: {}]
  %s1 = inlined_call_operand.hbm [shape: f32[256,128], index: 1, kind: input, shape index: {}]
  %s2 = inlined_call_operand.hbm [shape: f32[16,128], index: 2, kind: output, shape index: {}]
  %s3 = sld [smem:[#allocation0]]
  $region49: #{tpu_custom_call.1} parent=0
    _
  %s5 = ssub.s32 1, %s3
  %s6 = scalar_select 0, %s5, %s3
  $region1: #{tpu_custom_call.1} parent=0
    #allocation2 [shape = 'u8[16384]{0}', space=vmem, size = 0x4000, scoped, tag = 'input window, operand 0']
    #allocation3 [shape = 's32[2]{0}', space=sflag, size = 0x8, scoped, tag = 'scoped memory for tpu_custom_call.1']
    #allocation4 [shape = 's32[2]{0}', space=sflag, size = 0x8, scoped, tag = 'scoped memory for tpu_custom_call.1']
    #allocation5 [shape = 'u8[131072]{0}', space=vmem, size = 0x20000, scoped, tag = 'input window, operand 1, single buffered']
    #allocation6 [shape = 's32[1]{0}', space=sflag, size = 0x4, scoped, tag = 'scoped memory for tpu_custom_call.1']
    #allocation7 [shape = 'u8[8192]{0}', space=vmem, size = 0x2000, scoped, tag = 'output window, operand 0']
    %7 = vsyncpa [#allocation3], 0
    %s8 = scalar_lea.sflag [#allocation3], 1
    %9 = vsyncpa %s8, 0
    %10 = vsyncpa [#allocation6], 0
    %11 = vsyncpa [#allocation4], 0
    %s12 = scalar_lea.sflag [#allocation4], 1
    %13 = vsyncpa %s12, 0
    loop: start=0, step=1, limit=4
    $region2: #{tpu_custom_call.1} parent=1 // loop_pre_header
      _
    $region3: #{tpu_custom_call.1} parent=1 // loop_header
      %s15 = sphi 0, %s19
      %p16 = scmp.ge.s32.totalorder %s15, 4
      %s25 = sphi 0, %s27
      %s28 = sphi 0, %s25
      %s29 = sphi 0, %s28
      %s45 = sphi 0, %s29
      %s49 = sphi 0, %s49
      %s51 = sphi 0, %s49
      %s52 = sphi 0, %s51
      %s66 = sphi 0, %s52
      %s72 = sphi 0, %s74
      %s75 = sphi 0, %s72
      %s76 = sphi 0, %s75
      %s92 = sphi 0, %s76
    $region4: #{tpu_custom_call.1} parent=1 // loop_header_branch
      %18 = sbr.rel (%p16) target = $region8
    $region5: #{tpu_custom_call.1} parent=1 // loop_body
      %s20 = ssub.s32 %s15, 1
      %s21 = ssub.s32 %s15, 2
      %s22 = sadd.s32 %s15, 1
      %s23 = ssub.s32 %s15, %s22
      %p24 = scmp.eq.s32.totalorder %s23, 0
      %s26 = sadd.s32 %s25, 1
      %s27 = scalar_select %p24, %s25, %s26
      %p30 = pneg %p24
      %p31 = scmp.eq.s32.totalorder %s15, 1
      %p32 = por %p30, %p31
      %p33 = scmp.ne.s32.totalorder %s25, %s28
      %p34 = scmp.eq.s32.totalorder %s15, 0
      %p35 = por %p33, %p34
      %p36 = scmp.ne.s32.totalorder %s25, %s28
      %p37 = scmp.eq.s32.totalorder %s20, 1
      %p38 = por %p36, %p37
      %p39 = scmp.ne.s32.totalorder %s28, %s29
      %p40 = scmp.eq.s32.totalorder %s20, 0
      %p41 = por %p39, %p40
      %p42 = scmp.ne.s32.totalorder %s28, %s29
      %p43 = scmp.eq.s32.totalorder %s21, 1
      %p44 = por %p42, %p43
      %p46 = scmp.ne.s32.totalorder %s29, %s45
      %p47 = scmp.eq.s32.totalorder %s21, 0
      %p48 = por %p46, %p47
      %s50 = sadd.s32 %s49, 1
      %p53 = scmp.eq.s32.totalorder %s15, 1
      %p54 = scmp.ne.s32.totalorder %s49, %s51
      %p55 = scmp.eq.s32.totalorder %s15, 0
      %p56 = por %p54, %p55
      %p57 = scmp.ne.s32.totalorder %s49, %s51
      %p58 = scmp.eq.s32.totalorder %s20, 1
      %p59 = por %p57, %p58
      %p60 = scmp.ne.s32.totalorder %s51, %s52
      %p61 = scmp.eq.s32.totalorder %s20, 0
      %p62 = por %p60, %p61
      %p63 = scmp.ne.s32.totalorder %s51, %s52
      %p64 = scmp.eq.s32.totalorder %s21, 1
      %p65 = por %p63, %p64
      %p67 = scmp.ne.s32.totalorder %s52, %s66
      %p68 = scmp.eq.s32.totalorder %s21, 0
      %p69 = por %p67, %p68
      %s70 = ssub.s32 %s15, %s22
      %p71 = scmp.eq.s32.totalorder %s70, 0
      %s73 = sadd.s32 %s72, 1
      %s74 = scalar_select %p71, %s72, %s73
      %p77 = pneg %p71
      %p78 = scmp.eq.s32.totalorder %s15, 1
      %p79 = por %p77, %p78
      %p80 = scmp.ne.s32.totalorder %s72, %s75
      %p81 = scmp.eq.s32.totalorder %s15, 0
      %p82 = por %p80, %p81
      %p83 = scmp.ne.s32.totalorder %s72, %s75
      %p84 = scmp.eq.s32.totalorder %s20, 1
      %p85 = por %p83, %p84
      %p86 = scmp.ne.s32.totalorder %s75, %s76
      %p87 = scmp.eq.s32.totalorder %s20, 0
      %p88 = por %p86, %p87
      %p89 = scmp.ne.s32.totalorder %s75, %s76
      %p90 = scmp.eq.s32.totalorder %s21, 1
      %p91 = por %p89, %p90
      %p93 = scmp.ne.s32.totalorder %s76, %s92
      %p94 = scmp.eq.s32.totalorder %s21, 0
      %p95 = por %p93, %p94
      %p96 = scmp.le.s32.totalorder 1, %s15
      %p97 = scmp.lt.s32.totalorder %s15, 3
      %p98 = pnand %p96, %p97
      %p99 = pneg %p98
      // Predicated region
      $region9: #{tpu_custom_call.1} parent=5 // pred_check
        _
      $region10: #{tpu_custom_call.1} parent=5 // pred_check_branch
        %101 = sbr.rel (%p98) target = $region12
      $region11: #{tpu_custom_call.1} parent=5 // pred_region
        %s102 = ssub.s32 %s15, 1
        // Predicated region
        $region13: #{tpu_custom_call.1} parent=11 // pred_check
          %p103 = pneg %p62
        $region14: #{tpu_custom_call.1} parent=11 // pred_check_branch
          %105 = sbr.rel (%p103) target = $region16
        $region15: #{tpu_custom_call.1} parent=11 // pred_region
          %107 = vsyncadd [#allocation6], 0
          %s108 = sshll.u32 %s1, 4
          %s109 = int_to_ptr.hbm [resolvable:$true] %s108
          %s110 = sshll.u32 [#allocation5], 4
          %s111 = int_to_ptr.vmem [resolvable:$true] %s110
          %116 = dma.hbm_to_vmem [thread:$0]  %s109, 4096, %s111, [#allocation6], 128, 128, 8
        $region16: #{tpu_custom_call.1} parent=11 // pred_fallthru
          _
      $region12: #{tpu_custom_call.1} parent=5 // pred_fallthru
        _
      %p117 = scmp.lt.s32.totalorder %s15, 2
      // Predicated region
      $region17: #{tpu_custom_call.1} parent=5 // pred_check
        %p118 = pneg %p117
      $region18: #{tpu_custom_call.1} parent=5 // pred_check_branch
        %120 = sbr.rel (%p118) target = $region20
      $region19: #{tpu_custom_call.1} parent=5 // pred_region
        // Predicated region
        $region21: #{tpu_custom_call.1} parent=19 // pred_check
          %p121 = pneg %p35
        $region22: #{tpu_custom_call.1} parent=19 // pred_check_branch
          %123 = sbr.rel (%p121) target = $region24
        $region23: #{tpu_custom_call.1} parent=19 // pred_region
          %s124 = sand.u32 %s25, 1
          %s125 = scalar_lea.sflag [#allocation3], %s124
          %s126 = sand.u32 %s25, 1
          %s127 = smul.addr %s126, 16
          %s128 = scalar_lea.vmem [#allocation2], %s127
          %130 = vsyncadd %s125, 0
          %s131 = smul.addr %s15, 2
          %s132 = smul.addr %s131, 8
          %s133 = scalar_lea.hbm %s0, %s132
          %s135 = sshll.u32 %s133, 4
          %s136 = int_to_ptr.hbm [resolvable:$true] %s135
          %s137 = sshll.u32 %s128, 4
          %s138 = int_to_ptr.vmem [resolvable:$true] %s137
          %140 = dma.hbm_to_vmem [thread:$0]  %s136, 256, %s138, %s125
        $region24: #{tpu_custom_call.1} parent=19 // pred_fallthru
          _
      $region20: #{tpu_custom_call.1} parent=5 // pred_fallthru
        _
      %p141 = scmp.le.s32.totalorder 1, %s15
      %p142 = scmp.lt.s32.totalorder %s15, 3
      %p143 = pnand %p141, %p142
      %p144 = pneg %p143
      // Predicated region
      $region25: #{tpu_custom_call.1} parent=5 // pred_check
        _
      $region26: #{tpu_custom_call.1} parent=5 // pred_check_branch
        %146 = sbr.rel (%p143) target = $region28
      $region27: #{tpu_custom_call.1} parent=5 // pred_region
        %s147 = ssub.s32 %s15, 1
        %s148 = sand.u32 %s28, 1
        %s149 = scalar_lea.sflag [#allocation3], %s148
        %s150 = sand.u32 %s28, 1
        %s151 = smul.addr %s150, 16
        %s152 = scalar_lea.vmem [#allocation2], %s151
        // Predicated region
        $region29: #{tpu_custom_call.1} parent=27 // pred_check
          %p153 = pneg %p41
        $region30: #{tpu_custom_call.1} parent=27 // pred_check_branch
          %155 = sbr.rel (%p153) target = $region32
        $region31: #{tpu_custom_call.1} parent=27 // pred_region
          %157 = dma.done %s149, 256
        $region32: #{tpu_custom_call.1} parent=27 // pred_fallthru
          _
        // Predicated region
        $region33: #{tpu_custom_call.1} parent=27 // pred_check
          %p158 = pneg %p62
        $region34: #{tpu_custom_call.1} parent=27 // pred_check_branch
          %160 = sbr.rel (%p158) target = $region36
        $region35: #{tpu_custom_call.1} parent=27 // pred_region
          %162 = dma.done [#allocation6], 4096
        $region36: #{tpu_custom_call.1} parent=27 // pred_fallthru
          _
        %s163 = sand.u32 %s28, 1
        %s164 = scalar_lea.sflag [#allocation3], %s163
        %s165 = sand.u32 %s28, 1
        %s166 = smul.addr %s165, 16
        %s167 = scalar_lea.vmem [#allocation2], %s166
        %p168 = pneg %p41
        %p169 = pneg %p38
        %p170 = pneg %p62
        %p171 = pneg %p59
        %p172 = pneg %p88
        %p173 = pneg %p85
        %s174 = sand.u32 %s75, 1
        %s175 = scalar_lea.sflag [#allocation4], %s174
        %s176 = sand.u32 %s75, 1
        %s177 = smul.addr %s176, 8
        %s178 = scalar_lea.vmem [#allocation7], %s177
        %v179 = vld [vmem:[%s152] sm:$0xff]
        %v180 = vld [vmem:[%s152 + $0x8] sm:$0xff]
        %v181 = vld [vmem:[#allocation5] sm:$0xff]
        %v182 = vld [vmem:[#allocation5 + $0x8] sm:$0xff]
        %v183 = vld [vmem:[#allocation5 + $0x10] sm:$0xff]
        %v184 = vld [vmem:[#allocation5 + $0x18] sm:$0xff]
        %v185 = vld [vmem:[#allocation5 + $0x20] sm:$0xff]
        %v186 = vld [vmem:[#allocation5 + $0x28] sm:$0xff]
        %v187 = vld [vmem:[#allocation5 + $0x30] sm:$0xff]
        %v188 = vld [vmem:[#allocation5 + $0x38] sm:$0xff]
        %v189 = vld [vmem:[#allocation5 + $0x40] sm:$0xff]
        %v190 = vld [vmem:[#allocation5 + $0x48] sm:$0xff]
        %v191 = vld [vmem:[#allocation5 + $0x50] sm:$0xff]
        %v192 = vld [vmem:[#allocation5 + $0x58] sm:$0xff]
        %v193 = vld [vmem:[#allocation5 + $0x60] sm:$0xff]
        %v194 = vld [vmem:[#allocation5 + $0x68] sm:$0xff]
        %v195 = vld [vmem:[#allocation5 + $0x70] sm:$0xff]
        %v196 = vld [vmem:[#allocation5 + $0x78] sm:$0xff]
        %v197 = vld [vmem:[#allocation5 + $0x80] sm:$0xff]
        %v198 = vld [vmem:[#allocation5 + $0x88] sm:$0xff]
        %v199 = vld [vmem:[#allocation5 + $0x90] sm:$0xff]
        %v200 = vld [vmem:[#allocation5 + $0x98] sm:$0xff]
        %v201 = vld [vmem:[#allocation5 + $0xa0] sm:$0xff]
        %v202 = vld [vmem:[#allocation5 + $0xa8] sm:$0xff]
        %v203 = vld [vmem:[#allocation5 + $0xb0] sm:$0xff]
        %v204 = vld [vmem:[#allocation5 + $0xb8] sm:$0xff]
        %v205 = vld [vmem:[#allocation5 + $0xc0] sm:$0xff]
        %v206 = vld [vmem:[#allocation5 + $0xc8] sm:$0xff]
        %v207 = vld [vmem:[#allocation5 + $0xd0] sm:$0xff]
        %v208 = vld [vmem:[#allocation5 + $0xd8] sm:$0xff]
        %v209 = vld [vmem:[#allocation5 + $0xe0] sm:$0xff]
        %v210 = vld [vmem:[#allocation5 + $0xe8] sm:$0xff]
        %v211 = vld [vmem:[#allocation5 + $0xf0] sm:$0xff]
        %v212 = vld [vmem:[#allocation5 + $0xf8] sm:$0xff]
        %213 = vmatpush.msra.mxu0 %v196
        %214 = vmatpush.msra.mxu0 %v195
        %215 = vmatpush.msra.mxu0 %v194
        %216 = vmatpush.msra.mxu0 %v193
        %217 = vmatpush.msra.mxu0 %v192
        %218 = vmatpush.msra.mxu0 %v191
        %219 = vmatpush.msra.mxu0 %v190
        %220 = vmatpush.msra.mxu0 %v189
        %221 = vmatpush.msra.mxu0 %v188
        %222 = vmatpush.msra.mxu0 %v187
        %223 = vmatpush.msra.mxu0 %v186
        %224 = vmatpush.msra.mxu0 %v185
        %225 = vmatpush.msra.mxu0 %v184
        %226 = vmatpush.msra.mxu0 %v183
        %227 = vmatpush.msra.mxu0 %v182
        %228 = vmatpush.msra.mxu0 %v181
        %229 = vmatmul.f32.gmra.mxu0 %v179
        %v230 = vpop.f32.mrf.mxu0
        %v231 = vadd.f32 0.0, %v230
        %232 = vdwg.mxu0
        %233 = vmatpush.msra.mxu0 %v212
        %234 = vmatpush.msra.mxu0 %v211
        %235 = vmatpush.msra.mxu0 %v210
        %236 = vmatpush.msra.mxu0 %v209
        %237 = vmatpush.msra.mxu0 %v208
        %238 = vmatpush.msra.mxu0 %v207
        %239 = vmatpush.msra.mxu0 %v206
        %240 = vmatpush.msra.mxu0 %v205
        %241 = vmatpush.msra.mxu0 %v204
        %242 = vmatpush.msra.mxu0 %v203
        %243 = vmatpush.msra.mxu0 %v202
        %244 = vmatpush.msra.mxu0 %v201
        %245 = vmatpush.msra.mxu0 %v200
        %246 = vmatpush.msra.mxu0 %v199
        %247 = vmatpush.msra.mxu0 %v198
        %248 = vmatpush.msra.mxu0 %v197
        %249 = vmatmul.f32.gmra.mxu0 %v180
        %v250 = vpop.f32.mrf.mxu0
        %v251 = vadd.f32 %v231, %v250
        %252 = vdwg.mxu0
        %253 = vst [vmem:[%s178] sm:$0xff] %v251
        %s254 = sand.u32 %s75, 1
        %s255 = scalar_lea.sflag [#allocation4], %s254
        %s256 = sand.u32 %s75, 1
        %s257 = smul.addr %s256, 8
        %s258 = scalar_lea.vmem [#allocation7], %s257
        // Predicated region
        $region37: #{tpu_custom_call.1} parent=27 // pred_check
          %p259 = pneg %p85
        $region38: #{tpu_custom_call.1} parent=27 // pred_check_branch
          %261 = sbr.rel (%p259) target = $region40
        $region39: #{tpu_custom_call.1} parent=27 // pred_region
          %263 = vsyncadd %s255, 0
          %s264 = smul.addr %s20, 8
          %s265 = scalar_lea.hbm %s2, %s264
          %s267 = sshll.u32 %s258, 4
          %s268 = int_to_ptr.vmem [resolvable:$true] %s267
          %s269 = sshll.u32 %s265, 4
          %s270 = int_to_ptr.hbm [resolvable:$true] %s269
          %272 = dma.vmem_to_hbm [thread:$0]  %s268, 128, %s270, %s255
        $region40: #{tpu_custom_call.1} parent=27 // pred_fallthru
          _
      $region28: #{tpu_custom_call.1} parent=5 // pred_fallthru
        _
      %p273 = scmp.le.s32.totalorder 2, %s15
      // Predicated region
      $region41: #{tpu_custom_call.1} parent=5 // pred_check
        %p274 = pneg %p273
      $region42: #{tpu_custom_call.1} parent=5 // pred_check_branch
        %276 = sbr.rel (%p274) target = $region44
      $region43: #{tpu_custom_call.1} parent=5 // pred_region
        %s277 = ssub.s32 %s15, 2
        // Predicated region
        $region45: #{tpu_custom_call.1} parent=43 // pred_check
          %p278 = pneg %p91
        $region46: #{tpu_custom_call.1} parent=43 // pred_check_branch
          %280 = sbr.rel (%p278) target = $region48
        $region47: #{tpu_custom_call.1} parent=43 // pred_region
          %s281 = sand.u32 %s76, 1
          %s282 = scalar_lea.sflag [#allocation4], %s281
          %s283 = sand.u32 %s76, 1
          %s284 = smul.addr %s283, 8
          %s285 = scalar_lea.vmem [#allocation7], %s284
          %287 = dma.done %s282, 128
        $region48: #{tpu_custom_call.1} parent=43 // pred_fallthru
          _
      $region44: #{tpu_custom_call.1} parent=5 // pred_fallthru
        _
    $region6: #{tpu_custom_call.1} parent=1 // loop_footer
      %s19 = sadd.s32 1, %s15
    $region7: #{tpu_custom_call.1} parent=1 // loop_footer_branch
      %14 = sbr.rel target = $region3
    $region8: #{tpu_custom_call.1} parent=1 // loop_exit
      _
    %288 = vsyncpa [#allocation3], 1
    %s289 = scalar_lea.sflag [#allocation3], 1
    %290 = vsyncpa %s289, 1
    %291 = vsyncpa [#allocation6], 1
    %292 = vsyncpa [#allocation4], 1
    %s293 = scalar_lea.sflag [#allocation4], 1
    %294 = vsyncpa %s293, 1

</llo_original>
